<compile_context>
chip_gen: v6e
topology: v6e:2x2x1
jax: 0.10.0
libtpu: 0.0.40
codegen_flags: <defaults>
</compile_context>

<pallas_src>
import functools

import jax
import jax.numpy as jnp
from jax.experimental import pallas as pl
from jax.experimental.pallas import tpu as pltpu


def _round_up(x, m):
    return ((x + m - 1) // m) * m


def _erf_approx_f32(x):
    # Abramowitz & Stegun 7.1.26, |abs error| <= 1.5e-7 (fp32-level accuracy).
    a1 = 0.254829592
    a2 = -0.284496736
    a3 = 1.421413741
    a4 = -1.453152027
    a5 = 1.061405429
    p = 0.3275911
    ax = jnp.abs(x)
    t = 1.0 / (1.0 + p * ax)
    poly = ((((a5 * t + a4) * t + a3) * t + a2) * t + a1) * t
    y = 1.0 - poly * jnp.exp(-ax * ax)
    return jnp.where(x < 0.0, -y, y)


def _gelu_exact_f32(x):
    # Exact (erf-based) GELU, matching PyTorch nn.GELU() default.
    return 0.5 * x * (1.0 + _erf_approx_f32(x * 0.7071067811865476))


def _linear_kernel(x_ref, w_ref, b_ref, o_ref, acc_ref, *, apply_gelu):
    """One (tm, tn) output tile; K (grid axis 2) is the sequential reduction."""
    k = pl.program_id(2)

    @pl.when(k == 0)
    def _():
        acc_ref[...] = jnp.zeros_like(acc_ref)

    x = x_ref[...]
    if apply_gelu:
        # GELU is elementwise, so applying it per-K-chunk of the input before
        # the matmul is exact fusion of "GELU -> Linear".
        x = _gelu_exact_f32(x.astype(jnp.float32)).astype(x_ref.dtype)

    acc_ref[...] += jnp.dot(x, w_ref[...], preferred_element_type=jnp.float32)

    @pl.when(k == pl.num_programs(2) - 1)
    def _():
        o_ref[...] = (acc_ref[...] + b_ref[...].astype(jnp.float32)).astype(o_ref.dtype)


@functools.partial(jax.jit, static_argnames=("apply_gelu",))
def linear_pallas(x, w, b, *, apply_gelu=False):
    """y = (GELU(x) if apply_gelu else x) @ w + b, fused in one Pallas kernel.

    x: (N, d_in)   w: (d_in, d_out)   b: (d_out,)
    """
    n_rows, d_in = x.shape
    d_in_w, d_out = w.shape
    assert d_in == d_in_w, (d_in, d_in_w)

    # Pad rows only up to the next multiple of 8 (f32 sublane); common case: no pad.
    n8 = _round_up(n_rows, 8)
    if n8 != n_rows:
        x = jnp.pad(x, ((0, n8 - n_rows), (0, 0)))

    # Largest divisor tiles (<= 512 rows / 512 K / 512 N-lanes) -> no padding of
    # the weight / output dims, lane-dense (multiple-of-128 or full-dim) blocks.
    tm = next((c for c in (512, 256, 128, 64, 32, 16, 8) if n8 % c == 0), n8)
    tk = next((c for c in (512, 256, 128) if d_in % c == 0), d_in)
    tn = next((c for c in (512, 256, 128) if d_out % c == 0), d_out)

    grid = (n8 // tm, d_out // tn, d_in // tk)
    b2 = b.reshape(1, d_out)

    kernel = functools.partial(_linear_kernel, apply_gelu=apply_gelu)

    out = pl.pallas_call(
        kernel,
        out_shape=jax.ShapeDtypeStruct((n8, d_out), x.dtype),
        grid_spec=pltpu.PrefetchScalarGridSpec(
            num_scalar_prefetch=0,
            grid=grid,
            in_specs=[
                pl.BlockSpec((tm, tk), lambda i, j, k: (i, k)),   # activations
                pl.BlockSpec((tk, tn), lambda i, j, k: (k, j)),   # weights
                pl.BlockSpec((1, tn), lambda i, j, k: (0, j)),    # bias
            ],
            out_specs=pl.BlockSpec((tm, tn), lambda i, j, k: (i, j)),
            scratch_shapes=[pltpu.VMEM((tm, tn), jnp.float32)],
        ),
        compiler_params=pltpu.CompilerParams(
            # Output tiles (i, j) are independent -> parallel (megacore-shardable);
            # the K reduction owns the fp32 accumulator -> arbitrary (sequential).
            dimension_semantics=("parallel", "parallel", "arbitrary"),
        ),
    )(x, w, b2)

    return out[:n_rows] if n8 != n_rows else out


class MotionUndHeadPallas:
    """JAX/Pallas port of MotionUndHead (identity / linear / mlp_gelu projector)."""

    def __init__(self, input_dim, output_dim, projector_type="linear", depth=1,
                 *, key=None, dtype=jnp.float32):
        self.projector_type = projector_type
        self.output_dim = output_dim
        self.params = []
        if projector_type == "identity":
            return
        if projector_type not in ("linear", "mlp_gelu"):
            raise ValueError(f"Unknown projector type: {projector_type}")
        if key is None:
            key = jax.random.PRNGKey(0)
        n_layers = 1 if projector_type == "linear" else depth
        dims = [(input_dim, output_dim)] + [(output_dim, output_dim)] * (n_layers - 1)
        for fan_in, fan_out in dims:
            key, kw, kb = jax.random.split(key, 3)
            bound = 1.0 / (fan_in ** 0.5)  # PyTorch nn.Linear default init range
            w = jax.random.uniform(kw, (fan_in, fan_out), dtype, -bound, bound)
            b = jax.random.uniform(kb, (fan_out,), dtype, -bound, bound)
            self.params.append((w, b))

    def __call__(self, motion_tokens):
        if self.projector_type == "identity":
            return motion_tokens
        lead = motion_tokens.shape[:-1]
        x = motion_tokens.reshape(-1, motion_tokens.shape[-1])
        for idx, (w, b) in enumerate(self.params):
            # mlp_gelu: GELU precedes every Linear except the first.
            x = linear_pallas(x, w, b, apply_gelu=(idx > 0))
        return x.reshape(*lead, self.output_dim)


def _reference_forward(head, motion_tokens):
    """Pure-JAX reference matching the PyTorch forward (exact-erf GELU)."""
    if head.projector_type == "identity":
        return motion_tokens
    lead = motion_tokens.shape[:-1]
    y = motion_tokens.reshape(-1, motion_tokens.shape[-1]).astype(jnp.float32)
    for idx, (w, b) in enumerate(head.params):
        if idx > 0:
            y = 0.5 * y * (1.0 + jax.scipy.special.erf(y * 0.7071067811865476))
        y = jnp.dot(y, w.astype(jnp.float32),
                    precision=jax.lax.Precision.HIGHEST) + b.astype(jnp.float32)
    return y.reshape(*lead, head.output_dim)


if __name__ == "__main__":
    key = jax.random.PRNGKey(0)
    kx, k1, k2, kx2, k3 = jax.random.split(key, 5)

    # Small shapes consistent with the module: batch=2, seq=8, hidden=32 -> 64.
    B, S, D_IN, D_OUT = 2, 8, 32, 64
    x = jax.random.normal(kx, (B, S, D_IN), dtype=jnp.float32)

    # 1) projector_type='linear'
    head_lin = MotionUndHeadPallas(D_IN, D_OUT, projector_type="linear", key=k1)
    y_lin = jax.block_until_ready(head_lin(x))
    ref_lin = _reference_forward(head_lin, x)
    assert y_lin.shape == (B, S, D_OUT)
    assert jnp.allclose(y_lin, ref_lin, atol=1e-2, rtol=1e-2)

    # 2) projector_type='mlp_gelu', depth=2 (Linear -> GELU -> Linear)
    head_mlp = MotionUndHeadPallas(D_IN, D_OUT, projector_type="mlp_gelu", depth=2, key=k2)
    y_mlp = jax.block_until_ready(head_mlp(x))
    ref_mlp = _reference_forward(head_mlp, x)
    assert y_mlp.shape == (B, S, D_OUT)
    assert jnp.allclose(y_mlp, ref_mlp, atol=1e-2, rtol=1e-2)

    # 3) projector_type='identity'
    head_id = MotionUndHeadPallas(D_IN, D_IN, projector_type="identity")
    y_id = jax.block_until_ready(head_id(x))
    assert jnp.allclose(y_id, x)

    # 4) Larger config exercising multi-tile grid (row tiling + K accumulation + fused GELU).
    B2, S2, D_IN2, D_OUT2 = 4, 96, 1024, 256
    x_big = jax.random.normal(kx2, (B2, S2, D_IN2), dtype=jnp.float32)
    head_big = MotionUndHeadPallas(D_IN2, D_OUT2, projector_type="mlp_gelu", depth=2, key=k3)
    y_big = jax.block_until_ready(head_big(x_big))
    ref_big = _reference_forward(head_big, x_big)
    assert y_big.shape == (B2, S2, D_OUT2)
    assert jnp.allclose(y_big, ref_big, atol=1e-2, rtol=1e-2)

    print("KERNEL_OK")
</pallas_src>

<mosaic_0001>
module attributes {stable_mosaic.version = 11 : i64} {
  func.func @_linear_kernel(%arg0: i32, %arg1: i32, %arg2: i32, %arg3: memref<16x32xf32, #tpu.memory_space<vmem>>, %arg4: memref<32x64xf32, #tpu.memory_space<vmem>>, %arg5: memref<1x64xf32, #tpu.memory_space<vmem>>, %arg6: memref<16x64xf32, #tpu.memory_space<vmem>>, %arg7: memref<16x64xf32, #tpu.memory_space<vmem>>) attributes {dimension_semantics = [#tpu.dimension_semantics<parallel>, #tpu.dimension_semantics<parallel>, #tpu.dimension_semantics<arbitrary>], iteration_bounds = array<i64: 1, 1, 1>, scalar_prefetch = 0 : i64, scratch_operands = 1 : i64, tpu.core_type = #tpu.core_type<tc>, window_params = [{transform_indices = @transform_0, window_bounds = array<i64: 16, 32>}, {transform_indices = @transform_1, window_bounds = array<i64: 32, 64>}, {transform_indices = @transform_2, window_bounds = array<i64: 1, 64>}, {transform_indices = @transform_3, window_bounds = array<i64: 16, 64>}]} {
    %c0_i32 = arith.constant 0 : i32
    %0 = arith.cmpi eq, %arg2, %c0_i32 : i32
    %1 = arith.extui %0 : i1 to i32
    %c0_i32_0 = arith.constant 0 : i32
    %2 = arith.cmpi ne, %1, %c0_i32_0 : i32
    scf.if %2 {
      %cst_10 = arith.constant 0.000000e+00 : f32
      %12 = vector.broadcast %cst_10 : f32 to vector<16x64xf32>
      %c0_11 = arith.constant 0 : index
      %c0_12 = arith.constant 0 : index
      %13 = vector.load %arg7[%c0_11, %c0_12] : memref<16x64xf32, #tpu.memory_space<vmem>>, vector<16x64xf32>
      tpu.vector_store %arg7[%c0_11, %c0_12], %12 {strides = array<i32>} : memref<16x64xf32, #tpu.memory_space<vmem>>, vector<16x64xf32>,
    } else {
    }
    %c0 = arith.constant 0 : index
    %c0_1 = arith.constant 0 : index
    %3 = vector.load %arg3[%c0, %c0_1] : memref<16x32xf32, #tpu.memory_space<vmem>>, vector<16x32xf32>
    %c0_2 = arith.constant 0 : index
    %c0_3 = arith.constant 0 : index
    %4 = vector.load %arg7[%c0_2, %c0_3] : memref<16x64xf32, #tpu.memory_space<vmem>>, vector<16x64xf32>
    %c0_4 = arith.constant 0 : index
    %c0_5 = arith.constant 0 : index
    %5 = vector.load %arg4[%c0_4, %c0_5] : memref<32x64xf32, #tpu.memory_space<vmem>>, vector<32x64xf32>
    %cst = arith.constant dense<0.000000e+00> : vector<16x64xf32>
    %6 = tpu.matmul %3, %5, %cst {dimension_numbers = #tpu.dot_dimension_numbers<[1], [0], [0], [1], [0, 0, 1, 1], [], []>} : vector<16x32xf32>, vector<32x64xf32>, vector<16x64xf32> -> vector<16x64xf32>
    %7 = arith.addf %4, %6 : vector<16x64xf32>
    %c0_6 = arith.constant 0 : index
    %c0_7 = arith.constant 0 : index
    %8 = vector.load %arg7[%c0_6, %c0_7] : memref<16x64xf32, #tpu.memory_space<vmem>>, vector<16x64xf32>
    tpu.vector_store %arg7[%c0_6, %c0_7], %7 {strides = array<i32>} : memref<16x64xf32, #tpu.memory_space<vmem>>, vector<16x64xf32>,
    %c0_i32_8 = arith.constant 0 : i32
    %9 = arith.cmpi eq, %arg2, %c0_i32_8 : i32
    %10 = arith.extui %9 : i1 to i32
    %c0_i32_9 = arith.constant 0 : i32
    %11 = arith.cmpi ne, %10, %c0_i32_9 : i32
    scf.if %11 {
      %c0_10 = arith.constant 0 : index
      %c0_11 = arith.constant 0 : index
      %12 = vector.load %arg7[%c0_10, %c0_11] : memref<16x64xf32, #tpu.memory_space<vmem>>, vector<16x64xf32>
      %c0_12 = arith.constant 0 : index
      %c0_13 = arith.constant 0 : index
      %13 = vector.load %arg5[%c0_12, %c0_13] : memref<1x64xf32, #tpu.memory_space<vmem>>, vector<1x64xf32>
      %14 = vector.broadcast %13 : vector<1x64xf32> to vector<16x64xf32>
      %15 = arith.addf %12, %14 : vector<16x64xf32>
      %c0_14 = arith.constant 0 : index
      %c0_15 = arith.constant 0 : index
      %16 = vector.load %arg6[%c0_14, %c0_15] : memref<16x64xf32, #tpu.memory_space<vmem>>, vector<16x64xf32>
      tpu.vector_store %arg6[%c0_14, %c0_15], %15 {strides = array<i32>} : memref<16x64xf32, #tpu.memory_space<vmem>>, vector<16x64xf32>,
    } else {
    }
    return
  }
  func.func @transform_0(%arg0: i32, %arg1: i32, %arg2: i32) -> (i32, i32) {
    %c0_i32 = arith.constant 0 : i32
    return %arg0, %arg2 : i32, i32
  }
  func.func @transform_1(%arg0: i32, %arg1: i32, %arg2: i32) -> (i32, i32) {
    %c0_i32 = arith.constant 0 : i32
    return %arg2, %arg1 : i32, i32
  }
  func.func @transform_2(%arg0: i32, %arg1: i32, %arg2: i32) -> (i32, i32) {
    %c0_i32 = arith.constant 0 : i32
    %c0_i32_0 = arith.constant 0 : i32
    return %c0_i32, %arg1 : i32, i32
  }
  func.func @transform_3(%arg0: i32, %arg1: i32, %arg2: i32) -> (i32, i32) {
    %c0_i32 = arith.constant 0 : i32
    return %arg0, %arg1 : i32, i32
  }
}

</mosaic_0001>

<llo_original>
// kernel: linear_pallas.1
$region0: #{linear_pallas.1}
  #allocation0 [shape = 'u32[]', space=smem, size = 0x4, offset = 0x4, fixed_abs, tag = 'smem constant byte address 0x4 - core index']
  #allocation1 [shape = 'u32[144,128]{1,0:T(1,128)}', space=vmem, size = 0x12000, scoped, tag = 'internal scratch']
  #allocation2 [shape = 'f32[16,64]{1,0:T(8,128)}', space=vmem, size = 0x2000, scoped, tag = 'scratch operand']
  %s0 = inlined_call_operand.hbm [shape: f32[16,32], index: 0, kind: input, shape index: {}]
  %s1 = inlined_call_operand.hbm [shape: f32[32,64], index: 1, kind: input, shape index: {}]
  %s2 = inlined_call_operand.vmem [shape: f32[1,64], index: 2, kind: input, shape index: {}]
  %s3 = inlined_call_operand.hbm [shape: f32[16,64], index: 3, kind: output, shape index: {}]
  %s4 = sld [smem:[#allocation0]]
  $region38: #{linear_pallas.1} parent=0
    _
  %s6 = ssub.s32 1, %s4
  %s7 = scalar_select 0, %s6, %s4
  $region1: #{linear_pallas.1} parent=0
    #allocation3 [shape = 'u8[8192]{0}', space=vmem, size = 0x2000, scoped, tag = 'input window, operand 0, single buffered']
    #allocation4 [shape = 's32[1]{0}', space=sflag, size = 0x4, scoped, tag = 'scoped memory for linear_pallas.1']
    #allocation5 [shape = 's32[1]{0}', space=sflag, size = 0x4, scoped, tag = 'scoped memory for linear_pallas.1']
    #allocation6 [shape = 'u8[16384]{0}', space=vmem, size = 0x4000, scoped, tag = 'input window, operand 1, single buffered']
    #allocation7 [shape = 's32[1]{0}', space=sflag, size = 0x4, scoped, tag = 'scoped memory for linear_pallas.1']
    #allocation8 [shape = 'u8[8192]{0}', space=vmem, size = 0x2000, scoped, tag = 'output window, operand 0, single buffered']
    %8 = vsyncpa [#allocation4], 0
    %9 = vsyncpa [#allocation7], 0
    %10 = vsyncpa [#allocation5], 0
    // Predicated region
    $region2: #{linear_pallas.1} parent=1 // pred_check
      _
    $region3: #{linear_pallas.1} parent=1 // pred_check_branch
      %12 = sbr.rel (0) target = $region5
    $region4: #{linear_pallas.1} parent=1 // pred_region
      %s14 = ssub.s32 256, 256
      %15 = vsyncadd [#allocation4], %s14
      %s16 = sshll.u32 [#allocation3], 4
      %s17 = int_to_ptr.vmem [resolvable:$true] %s16
      %22 = dma.hbm_to_vmem [thread:$0]  %s0, 256, %s17, [#allocation4], 128, 128, 8
    $region5: #{linear_pallas.1} parent=1 // pred_fallthru
      _
    // Predicated region
    $region6: #{linear_pallas.1} parent=1 // pred_check
      _
    $region7: #{linear_pallas.1} parent=1 // pred_check_branch
      %24 = sbr.rel (0) target = $region9
    $region8: #{linear_pallas.1} parent=1 // pred_region
      %s26 = ssub.s32 512, 512
      %27 = vsyncadd [#allocation7], %s26
      %s28 = sshll.u32 [#allocation6], 4
      %s29 = int_to_ptr.vmem [resolvable:$true] %s28
      %34 = dma.hbm_to_vmem [thread:$0]  %s1, 512, %s29, [#allocation7], 128, 128, 8
    $region9: #{linear_pallas.1} parent=1 // pred_fallthru
      _
    // Predicated region
    $region10: #{linear_pallas.1} parent=1 // pred_check
      _
    $region11: #{linear_pallas.1} parent=1 // pred_check_branch
      %36 = sbr.rel (0) target = $region13
    $region12: #{linear_pallas.1} parent=1 // pred_region
      _
    $region13: #{linear_pallas.1} parent=1 // pred_fallthru
      _
    // Predicated region
    $region14: #{linear_pallas.1} parent=1 // pred_check
      _
    $region15: #{linear_pallas.1} parent=1 // pred_check_branch
      %38 = sbr.rel (0) target = $region17
    $region16: #{linear_pallas.1} parent=1 // pred_region
      %39 = dma.done [#allocation4], 256
    $region17: #{linear_pallas.1} parent=1 // pred_fallthru
      _
    // Predicated region
    $region18: #{linear_pallas.1} parent=1 // pred_check
      _
    $region19: #{linear_pallas.1} parent=1 // pred_check_branch
      %41 = sbr.rel (0) target = $region21
    $region20: #{linear_pallas.1} parent=1 // pred_region
      %42 = dma.done [#allocation7], 512
    $region21: #{linear_pallas.1} parent=1 // pred_fallthru
      _
    %p43 = scmp.eq.s32.totalorder 0, 0
    // Predicated region
    $region22: #{linear_pallas.1} parent=1 // pred_check
      %p44 = pneg %p43
    $region23: #{linear_pallas.1} parent=1 // pred_check_branch
      %46 = sbr.rel (%p44) target = $region25
    $region24: #{linear_pallas.1} parent=1 // pred_region
      %vm47 = vcmask 523264
      %48 = vst.msk [vmem:[#allocation2] sm:$0xff] %vm47, 0.0
      %49 = vst.msk [vmem:[#allocation2 + $0x8] sm:$0xff] %vm47, 0.0
    $region25: #{linear_pallas.1} parent=1 // pred_fallthru
      _
    %v50 = vld [vmem:[#allocation3] sm:$0xff]
    %v51 = vld [vmem:[#allocation3 + $0x8] sm:$0xff]
    %v52 = vld [vmem:[#allocation2] sm:$0xff]
    %v53 = vld [vmem:[#allocation2 + $0x8] sm:$0xff]
    %v54 = vld [vmem:[#allocation6] sm:$0xff]
    %v55 = vld [vmem:[#allocation6 + $0x8] sm:$0xff]
    %v56 = vld [vmem:[#allocation6 + $0x10] sm:$0xff]
    %v57 = vld [vmem:[#allocation6 + $0x18] sm:$0xff]
    %vm58 = vcmask 261120
    %v60 = vsel %vm58, %v50, 0
    %v63 = vsel %vm58, %v51, 0
    %65 = vmatprep.subr.mxu0 0.0
    %66 = vmatpush1.msra.mxu0 0.0
    %67 = vmatprep.subr.mxu0 0.0
    %68 = vmatpush1.msra.mxu0 0.0
    %69 = vmatprep.subr.mxu0 0.0
    %70 = vmatpush1.msra.mxu0 0.0
    %71 = vmatprep.subr.mxu0 0.0
    %72 = vmatpush1.msra.mxu0 0.0
    %73 = vmatprep.subr.mxu0 0.0
    %74 = vmatpush1.msra.mxu0 0.0
    %75 = vmatprep.subr.mxu0 0.0
    %76 = vmatpush1.msra.mxu0 0.0
    %77 = vmatprep.subr.mxu0 0.0
    %78 = vmatpush1.msra.mxu0 0.0
    %79 = vmatprep.subr.mxu0 0.0
    %80 = vmatpush1.msra.mxu0 0.0
    %81 = vmatprep.subr.mxu0 0.0
    %82 = vmatpush1.msra.mxu0 0.0
    %83 = vmatprep.subr.mxu0 0.0
    %84 = vmatpush1.msra.mxu0 0.0
    %85 = vmatprep.subr.mxu0 0.0
    %86 = vmatpush1.msra.mxu0 0.0
    %87 = vmatprep.subr.mxu0 0.0
    %88 = vmatpush1.msra.mxu0 0.0
    %89 = vmatprep.subr.mxu0 0.0
    %90 = vmatpush1.msra.mxu0 %v57
    %91 = vmatprep.subr.mxu0 0.0
    %92 = vmatpush1.msra.mxu0 %v56
    %93 = vmatprep.subr.mxu0 0.0
    %94 = vmatpush1.msra.mxu0 %v55
    %95 = vmatprep.subr.mxu0 0.0
    %96 = vmatpush1.msra.mxu0 %v54
    %97 = vmatprep.subr.mxu0 0.0
    %98 = vmatpush2.msra.mxu0 0.0
    %99 = vmatprep.subr.mxu0 0.0
    %100 = vmatpush2.msra.mxu0 0.0
    %101 = vmatprep.subr.mxu0 0.0
    %102 = vmatpush2.msra.mxu0 0.0
    %103 = vmatprep.subr.mxu0 0.0
    %104 = vmatpush2.msra.mxu0 0.0
    %105 = vmatprep.subr.mxu0 0.0
    %106 = vmatpush2.msra.mxu0 0.0
    %107 = vmatprep.subr.mxu0 0.0
    %108 = vmatpush2.msra.mxu0 0.0
    %109 = vmatprep.subr.mxu0 0.0
    %110 = vmatpush2.msra.mxu0 0.0
    %111 = vmatprep.subr.mxu0 0.0
    %112 = vmatpush2.msra.mxu0 0.0
    %113 = vmatprep.subr.mxu0 0.0
    %114 = vmatpush2.msra.mxu0 0.0
    %115 = vmatprep.subr.mxu0 0.0
    %116 = vmatpush2.msra.mxu0 0.0
    %117 = vmatprep.subr.mxu0 0.0
    %118 = vmatpush2.msra.mxu0 0.0
    %119 = vmatprep.subr.mxu0 0.0
    %120 = vmatpush2.msra.mxu0 0.0
    %121 = vmatprep.subr.mxu0 0.0
    %122 = vmatpush2.msra.mxu0 0.0
    %123 = vmatprep.subr.mxu0 0.0
    %124 = vmatpush2.msra.mxu0 0.0
    %125 = vmatprep.subr.mxu0 0.0
    %126 = vmatpush2.msra.mxu0 0.0
    %127 = vmatprep.subr.mxu0 0.0
    %128 = vmatpush2.msra.mxu0 0.0
    %129 = vmatprep.mubr.f32.mxu0 0.0
    %130 = vmatmul.mubr.f32.gmra.mxu0 %v60
    %v131 = vpop.f32.mrf.mxu0
    %v132 = vadd.f32 0.0, %v131
    %v133 = vpop.f32.mrf.mxu0
    %134 = vmatprep.mubr.f32.mxu0 0.0
    %135 = vmatmul.mubr.f32.gmra.mxu0 %v63
    %v136 = vpop.f32.mrf.mxu0
    %v137 = vadd.f32 0.0, %v136
    %v138 = vpop.f32.mrf.mxu0
    %139 = vdwg.mxu0
    %v140 = vadd.f32 %v52, %v132
    %v141 = vadd.f32 %v53, %v137
    %vm142 = vcmask 523264
    %143 = vst.msk [vmem:[#allocation2] sm:$0xff] %vm142, %v140
    %144 = vst.msk [vmem:[#allocation2 + $0x8] sm:$0xff] %vm142, %v141
    // Predicated region
    $region26: #{linear_pallas.1} parent=1 // pred_check
      %p145 = pneg %p43
    $region27: #{linear_pallas.1} parent=1 // pred_check_branch
      %147 = sbr.rel (%p145) target = $region29
    $region28: #{linear_pallas.1} parent=1 // pred_region
      %v148 = vld [vmem:[#allocation2] sm:$0xff]
      %v149 = vld [vmem:[#allocation2 + $0x8] sm:$0xff]
      %v150 = vld [vmem:[%s2] sm:$0x1]
      %v152 = vlaneseq
      %v153 = vshrl.u32 %v152, 7
      %v154 = vsub.s32 0, %v153
      %v155 = vrot.slane %v150, %v154
      %v157 = vadd.f32 %v148, %v155
      %v158 = vadd.f32 %v149, %v155
      %159 = vst.msk [vmem:[#allocation8] sm:$0xff] %vm142, %v157
      %160 = vst.msk [vmem:[#allocation8 + $0x8] sm:$0xff] %vm142, %v158
    $region29: #{linear_pallas.1} parent=1 // pred_fallthru
      _
    // Predicated region
    $region30: #{linear_pallas.1} parent=1 // pred_check
      _
    $region31: #{linear_pallas.1} parent=1 // pred_check_branch
      %162 = sbr.rel (0) target = $region33
    $region32: #{linear_pallas.1} parent=1 // pred_region
      %s164 = ssub.s32 256, 256
      %165 = vsyncadd [#allocation5], %s164
      %s166 = sshll.u32 [#allocation8], 4
      %s167 = int_to_ptr.vmem [resolvable:$true] %s166
      %172 = dma.vmem_to_hbm [thread:$0]  %s167, 256, %s3, [#allocation5], 128, 128, 8
    $region33: #{linear_pallas.1} parent=1 // pred_fallthru
      _
    // Predicated region
    $region34: #{linear_pallas.1} parent=1 // pred_check
      _
    $region35: #{linear_pallas.1} parent=1 // pred_check_branch
      %174 = sbr.rel (0) target = $region37
    $region36: #{linear_pallas.1} parent=1 // pred_region
      %175 = dma.done [#allocation5], 256
    $region37: #{linear_pallas.1} parent=1 // pred_fallthru
      _
    %176 = vsyncpa [#allocation4], 1
    %177 = vsyncpa [#allocation7], 1
    %178 = vsyncpa [#allocation5], 1

</llo_original>
